<compile_context>
chip_gen: v5e
topology: v5e:2x2
jax: 0.10.0
libtpu: 0.0.40
codegen_flags: <defaults>
</compile_context>

<pallas_src>
import functools

import jax
import jax.numpy as jnp
import numpy as np
from jax import lax
from jax.experimental import pallas as pl
from jax.experimental.pallas import tpu as pltpu

IN_FEATURES = 16
HIDDEN = 32
HID8 = HIDDEN // 8            # hidden_features // 8 branch (U2 / U3)
OUT_FEATURES = IN_FEATURES    # out_features defaults to in_features
RANK = 10
N_TASKS = 3
ALPHA_LORA = 1.0
LN_EPS = 1e-6

FOLD = 8                          # rows folded into the lane axis
LANES = FOLD * IN_FEATURES        # 128  — folded input width
OUT_LANES = FOLD * OUT_FEATURES   # 128  — folded output width
HB = FOLD * HIDDEN                # 256  — folded width of one branch
HB2 = 2 * HB                      # 512  — [branch1 | branch3]
NSEG = HB2 // HIDDEN              # 16   — LayerNorm segments per folded row
TM_MIN = 128                      # row-tile granularity (keeps bf16 sublanes legal)


def _round_up(v, m):
    return ((v + m - 1) // m) * m


def _layernorm(v, gamma, beta):
    mu = jnp.mean(v, axis=-1, keepdims=True)
    var = jnp.mean(jnp.square(v - mu), axis=-1, keepdims=True)
    return (v - mu) * lax.rsqrt(var + LN_EPS) * gamma + beta


def _block_diag(block, reps):
    """block (kin,kout) -> (reps*kin, reps*kout) block-diagonal matrix."""
    kin, kout = block.shape
    eye = jnp.eye(reps, dtype=block.dtype)
    return (eye[:, None, :, None] * block[None, :, None, :]).reshape(
        reps * kin, reps * kout)


# ---------------------------------------------------------------------------
# Kernel: one folded projection [h1|h3|mean1|mean3], selector-matmul LN stats,
# fused CP product, folded final projection -> dense (tm/8, 128) store.
# ---------------------------------------------------------------------------
def polymlp_kernel(xf_ref, wbig_ref, s_ref, rg_ref, wc_ref, slab_ref, out_ref,
                   *, mxu_dtype):
    slab = slab_ref[...]                       # (8, 512) f32 constants
    bcent = slab[0:1, :]                       # centered U1 / U3∘U2 biases
    beta = slab[1:2, :]                        # LN shifts (alpha folded into branch 3)
    bc = slab[2:3, :OUT_LANES]                 # tiled b_C

    # [h1 | h3 | mean1 | mean3]: one dense K=128 matmul (LN mean is linear in x).
    haug = jnp.dot(xf_ref[...], wbig_ref[...], preferred_element_type=jnp.float32)
    d = haug[:, :HB2] - haug[:, HB2:] + bcent  # LN-centered pre-activations (r, 512)

    # Per-32-lane-segment variance via a constant 0/1 selector matmul; rsqrt -> EUP.
    ssq = jnp.dot((d * d).astype(mxu_dtype), s_ref[...],
                  preferred_element_type=jnp.float32)            # (r, 16)
    inv = lax.rsqrt(ssq * (1.0 / HIDDEN) + LN_EPS)               # (r, 16)

    # Broadcast invstd back to lanes with gamma (and alpha) pre-folded in.
    scale = jnp.dot(inv.astype(mxu_dtype), rg_ref[...],
                    preferred_element_type=jnp.float32)          # (r, 512)
    outn = d * scale + beta                    # [LN1(out1) | 1 + alpha*LN3(out3)]

    y = outn[:, :HB] * outn[:, HB:]            # out1 + alpha*out1*out3   (r, 256)
    out = jnp.dot(y.astype(mxu_dtype), wc_ref[...],
                  preferred_element_type=jnp.float32) + bc       # (r, 128) dense
    out_ref[...] = out.astype(out_ref.dtype)


# ---------------------------------------------------------------------------
# Wrapper: parameter-only algebraic fusion + block-diagonal weight prep.
# ---------------------------------------------------------------------------
def _prep_params(params, task, mxu_dtype):
    w1 = params["W_U1"] + ALPHA_LORA * (params["B_U1"][task] @ params["A_U1"][task])
    w2 = params["W_U2"] + ALPHA_LORA * (params["B_U2"][task] @ params["A_U2"][task])
    w3 = params["W_U3"] + ALPHA_LORA * (params["B_U3"][task] @ params["A_U3"][task])
    wc = params["W_C"] + ALPHA_LORA * (params["B_C"][task] @ params["A_C"][task])
    w23 = w3 @ w2                                   # U3_eff ∘ U2_eff   (HIDDEN, IN)
    b23 = params["b_U3"] + w3 @ params["b_U2"]      # fused bias
    b1 = params["b_U1"]
    alpha = params["alpha"].reshape(())

    # LN mean is linear in x -> "mean columns", replicated 32x per segment so the
    # centered value d = h - mean is formed lane-wise with one subtract.
    m1 = jnp.tile(jnp.mean(w1, axis=0)[:, None], (1, HIDDEN))     # (16, 32)
    m3 = jnp.tile(jnp.mean(w23, axis=0)[:, None], (1, HIDDEN))    # (16, 32)

    wbig = jnp.concatenate(
        [_block_diag(w1.T, FOLD), _block_diag(w23.T, FOLD),
         _block_diag(m1, FOLD), _block_diag(m3, FOLD)], axis=1)   # (128, 1024)
    wc_bd = _block_diag(wc.T, FOLD)                               # (256, 128)

    # Segment selectors for the 32-lane LN groups.
    seg = jnp.arange(HB2) // HIDDEN
    sel = (seg[None, :] == jnp.arange(NSEG)[:, None]).astype(jnp.float32)  # (16, 512)
    gamma = jnp.concatenate([jnp.tile(params["g1"], FOLD),
                             jnp.tile(alpha * params["g3"], FOLD)])
    s_mat = sel.T                                                 # (512, 16)
    rg = sel * gamma[None, :]                                     # (16, 512)

    bcent = jnp.concatenate([jnp.tile(b1 - jnp.mean(b1), FOLD),
                             jnp.tile(b23 - jnp.mean(b23), FOLD)])
    beta = jnp.concatenate([jnp.tile(params["be1"], FOLD),
                            jnp.tile(1.0 + alpha * params["be3"], FOLD)])
    bc_bd = jnp.tile(params["b_C"], FOLD)

    slab = jnp.zeros((8, HB2), jnp.float32)
    slab = slab.at[0, :].set(bcent).at[1, :].set(beta).at[2, :OUT_LANES].set(bc_bd)

    md = mxu_dtype
    return wbig.astype(md), s_mat.astype(md), rg.astype(md), wc_bd.astype(md), slab


def polymlp_onelora_forward(x, params, task, *, tm=4096, mxu_dtype=jnp.float32):
    """x: (B, H, W, C_in) channels-last; returns (B, H, W, out_features)."""
    B, H, W, C = x.shape
    assert C == IN_FEATURES
    N = B * H * W

    # Row tile: multiple of 128; cap so the grid gets >=4 steps when N allows.
    tm_eff = max(TM_MIN, min(_round_up(tm, TM_MIN), _round_up(pl.cdiv(N, 4), TM_MIN)))
    grid = pl.cdiv(N, tm_eff)
    n_pad = grid * tm_eff

    x2 = x.reshape(N, C).astype(mxu_dtype)
    if n_pad != N:
        x2 = jnp.pad(x2, ((0, n_pad - N), (0, 0)))
    xf = x2.reshape(n_pad // FOLD, LANES)          # lane-dense folded input (free)

    wbig, s_mat, rg, wc_bd, slab = _prep_params(params, task, mxu_dtype)

    rows_f = n_pad // FOLD
    tm_f = tm_eff // FOLD

    cost = pl.CostEstimate(
        flops=2 * rows_f * (LANES * wbig.shape[1] + HB2 * NSEG + NSEG * HB2
                            + HB * OUT_LANES),
        transcendentals=rows_f * NSEG,
        bytes_accessed=(xf.size * xf.dtype.itemsize
                        + rows_f * OUT_LANES * 4
                        + wbig.size * wbig.dtype.itemsize
                        + s_mat.size * s_mat.dtype.itemsize
                        + rg.size * rg.dtype.itemsize
                        + wc_bd.size * wc_bd.dtype.itemsize
                        + slab.size * slab.dtype.itemsize),
    )

    outf = pl.pallas_call(
        functools.partial(polymlp_kernel, mxu_dtype=mxu_dtype),
        out_shape=jax.ShapeDtypeStruct((rows_f, OUT_LANES), jnp.float32),
        grid=(grid,),
        in_specs=[
            pl.BlockSpec((tm_f, LANES), lambda i: (i, 0)),
            pl.BlockSpec(wbig.shape, lambda i: (0, 0)),
            pl.BlockSpec(s_mat.shape, lambda i: (0, 0)),
            pl.BlockSpec(rg.shape, lambda i: (0, 0)),
            pl.BlockSpec(wc_bd.shape, lambda i: (0, 0)),
            pl.BlockSpec(slab.shape, lambda i: (0, 0)),
        ],
        out_specs=pl.BlockSpec((tm_f, OUT_LANES), lambda i: (i, 0)),
        compiler_params=pltpu.CompilerParams(dimension_semantics=("parallel",)),
        cost_estimate=cost,
    )(xf, wbig, s_mat, rg, wc_bd, slab)

    out2d = outf.reshape(n_pad, OUT_FEATURES)[:N]  # dense lanes -> rows (free)
    return out2d.reshape(B, H, W, OUT_FEATURES).astype(x.dtype)


# ---------------------------------------------------------------------------
# Pure-JAX reference mirroring the (unfused) PyTorch forward.
# ---------------------------------------------------------------------------
def ref_forward(x, params, task):
    def proj(v, Wb, b, Wl):
        return v @ Wb.T + b + ALPHA_LORA * (v @ Wl.T)

    wl_u1 = params["B_U1"][task] @ params["A_U1"][task]
    wl_u2 = params["B_U2"][task] @ params["A_U2"][task]
    wl_u3 = params["B_U3"][task] @ params["A_U3"][task]
    wl_c = params["B_C"][task] @ params["A_C"][task]

    out1 = proj(x, params["W_U1"], params["b_U1"], wl_u1)
    out2 = proj(x, params["W_U2"], params["b_U2"], wl_u2)
    out3 = proj(out2, params["W_U3"], params["b_U3"], wl_u3)
    out1 = _layernorm(out1, params["g1"], params["be1"])
    out3 = _layernorm(out3, params["g3"], params["be3"])
    out_so = out1 * out3
    out1 = out1 + params["alpha"] * out_so
    return proj(out1, params["W_C"], params["b_C"], wl_c)


def init_params(key):
    ks = jax.random.split(key, 16)

    def rnd(k, shape, scale=0.1):
        return scale * jax.random.normal(k, shape, jnp.float32)

    return dict(
        W_U1=rnd(ks[0], (HIDDEN, IN_FEATURES)),
        b_U1=rnd(ks[1], (HIDDEN,)),
        A_U1=rnd(ks[2], (N_TASKS, RANK, IN_FEATURES)),
        B_U1=rnd(ks[3], (N_TASKS, HIDDEN, RANK)),
        W_U2=rnd(ks[4], (HID8, IN_FEATURES)),
        b_U2=rnd(ks[5], (HID8,)),
        A_U2=rnd(ks[6], (N_TASKS, RANK, IN_FEATURES)),
        B_U2=rnd(ks[7], (N_TASKS, HID8, RANK)),
        W_U3=rnd(ks[8], (HIDDEN, HID8)),
        b_U3=rnd(ks[9], (HIDDEN,)),
        A_U3=rnd(ks[10], (N_TASKS, RANK, HID8)),
        B_U3=rnd(ks[11], (N_TASKS, HIDDEN, RANK)),
        g1=jnp.ones((HIDDEN,), jnp.float32),
        be1=jnp.zeros((HIDDEN,), jnp.float32),
        g3=jnp.ones((HIDDEN,), jnp.float32),
        be3=jnp.zeros((HIDDEN,), jnp.float32),
        alpha=jnp.ones((), jnp.float32),            # nn.Parameter(torch.ones(1))
        W_C=rnd(ks[12], (OUT_FEATURES, HIDDEN)),
        b_C=rnd(ks[13], (OUT_FEATURES,)),
        A_C=rnd(ks[14], (N_TASKS, RANK, HIDDEN)),
        B_C=rnd(ks[15], (N_TASKS, OUT_FEATURES, RANK)),
    )
    # TODO(synk): get_feat / get_cur_feat feature-covariance accumulation and the
    # use_spatial Spatial_Shift branch are stateful / disabled by default and not lowered.


if __name__ == "__main__":
    key = jax.random.PRNGKey(0)
    kx, kp = jax.random.split(key)
    # (B, H, W, C_in) channels-last; N = 200 rows exercises the multi-step grid
    # and the row-padding path.
    x = jax.random.normal(kx, (2, 10, 10, IN_FEATURES), jnp.float32)
    params = init_params(kp)
    task = 1

    ref = ref_forward(x, params, task)

    # Default f32 MXU path: matches the PyTorch module numerics tightly.
    out = jax.block_until_ready(polymlp_onelora_forward(x, params, task))
    assert out.shape == (2, 10, 10, OUT_FEATURES)
    np.testing.assert_allclose(np.asarray(out), np.asarray(ref), rtol=1e-4, atol=1e-4)

    # Optional bf16-MXU-operand path (f32 accumulate): reduced-precision lever
    # from the perf review; checked at a correspondingly looser tolerance.
    out_bf16 = jax.block_until_ready(
        polymlp_onelora_forward(x, params, task, mxu_dtype=jnp.bfloat16))
    np.testing.assert_allclose(np.asarray(out_bf16), np.asarray(ref), rtol=0.1, atol=0.1)

    print("KERNEL_OK")
</pallas_src>

<mosaic_0001>
module attributes {stable_mosaic.version = 11 : i64} {
  func.func @polymlp_kernel(%arg0: i32, %arg1: memref<16x128xf32, #tpu.memory_space<vmem>>, %arg2: memref<128x1024xf32, #tpu.memory_space<vmem>>, %arg3: memref<512x16xf32, #tpu.memory_space<vmem>>, %arg4: memref<16x512xf32, #tpu.memory_space<vmem>>, %arg5: memref<256x128xf32, #tpu.memory_space<vmem>>, %arg6: memref<8x512xf32, #tpu.memory_space<vmem>>, %arg7: memref<16x128xf32, #tpu.memory_space<vmem>>) attributes {dimension_semantics = [#tpu.dimension_semantics<parallel>], iteration_bounds = array<i64: 2>, scalar_prefetch = 0 : i64, scratch_operands = 0 : i64, tpu.core_type = #tpu.core_type<tc>, window_params = [{transform_indices = @transform_0, window_bounds = array<i64: 16, 128>}, {pipeline_mode = #tpu.pipeline_mode<synchronous>, transform_indices = @transform_1, window_bounds = array<i64: 128, 1024>}, {pipeline_mode = #tpu.pipeline_mode<synchronous>, transform_indices = @transform_2, window_bounds = array<i64: 512, 16>}, {pipeline_mode = #tpu.pipeline_mode<synchronous>, transform_indices = @transform_3, window_bounds = array<i64: 16, 512>}, {pipeline_mode = #tpu.pipeline_mode<synchronous>, transform_indices = @transform_4, window_bounds = array<i64: 256, 128>}, {pipeline_mode = #tpu.pipeline_mode<synchronous>, transform_indices = @transform_5, window_bounds = array<i64: 8, 512>}, {transform_indices = @transform_6, window_bounds = array<i64: 16, 128>}]} {
    %c0 = arith.constant 0 : index
    %c0_0 = arith.constant 0 : index
    %0 = vector.load %arg6[%c0, %c0_0] : memref<8x512xf32, #tpu.memory_space<vmem>>, vector<8x512xf32>
    %1 = vector.extract_strided_slice %0 {offsets = [0, 0], sizes = [1, 512], strides = [1, 1]} : vector<8x512xf32> to vector<1x512xf32>
    %2 = vector.extract_strided_slice %0 {offsets = [1, 0], sizes = [1, 512], strides = [1, 1]} : vector<8x512xf32> to vector<1x512xf32>
    %3 = vector.extract_strided_slice %0 {offsets = [2, 0], sizes = [1, 128], strides = [1, 1]} : vector<8x512xf32> to vector<1x128xf32>
    %c0_1 = arith.constant 0 : index
    %c0_2 = arith.constant 0 : index
    %4 = vector.load %arg1[%c0_1, %c0_2] : memref<16x128xf32, #tpu.memory_space<vmem>>, vector<16x128xf32>
    %c0_3 = arith.constant 0 : index
    %c0_4 = arith.constant 0 : index
    %5 = vector.load %arg2[%c0_3, %c0_4] : memref<128x1024xf32, #tpu.memory_space<vmem>>, vector<128x1024xf32>
    %cst = arith.constant dense<0.000000e+00> : vector<16x1024xf32>
    %6 = tpu.matmul %4, %5, %cst {dimension_numbers = #tpu.dot_dimension_numbers<[1], [0], [0], [1], [0, 0, 1, 1], [], []>} : vector<16x128xf32>, vector<128x1024xf32>, vector<16x1024xf32> -> vector<16x1024xf32>
    %7 = vector.extract_strided_slice %6 {offsets = [0, 0], sizes = [16, 512], strides = [1, 1]} : vector<16x1024xf32> to vector<16x512xf32>
    %8 = vector.extract_strided_slice %6 {offsets = [0, 512], sizes = [16, 512], strides = [1, 1]} : vector<16x1024xf32> to vector<16x512xf32>
    %9 = arith.subf %7, %8 : vector<16x512xf32>
    %10 = vector.broadcast %1 : vector<1x512xf32> to vector<16x512xf32>
    %11 = arith.addf %9, %10 : vector<16x512xf32>
    %12 = arith.mulf %11, %11 : vector<16x512xf32>
    %c0_5 = arith.constant 0 : index
    %c0_6 = arith.constant 0 : index
    %13 = vector.load %arg3[%c0_5, %c0_6] : memref<512x16xf32, #tpu.memory_space<vmem>>, vector<512x16xf32>
    %cst_7 = arith.constant dense<0.000000e+00> : vector<16x16xf32>
    %14 = tpu.matmul %12, %13, %cst_7 {dimension_numbers = #tpu.dot_dimension_numbers<[1], [0], [0], [1], [0, 0, 1, 1], [], []>} : vector<16x512xf32>, vector<512x16xf32>, vector<16x16xf32> -> vector<16x16xf32>
    %cst_8 = arith.constant 3.125000e-02 : f32
    %15 = vector.broadcast %cst_8 : f32 to vector<16x16xf32>
    %16 = arith.mulf %14, %15 : vector<16x16xf32>
    %cst_9 = arith.constant 9.99999997E-7 : f32
    %17 = vector.broadcast %cst_9 : f32 to vector<16x16xf32>
    %18 = arith.addf %16, %17 : vector<16x16xf32>
    %19 = math.rsqrt %18 : vector<16x16xf32>
    %c0_10 = arith.constant 0 : index
    %c0_11 = arith.constant 0 : index
    %20 = vector.load %arg4[%c0_10, %c0_11] : memref<16x512xf32, #tpu.memory_space<vmem>>, vector<16x512xf32>
    %cst_12 = arith.constant dense<0.000000e+00> : vector<16x512xf32>
    %21 = tpu.matmul %19, %20, %cst_12 {dimension_numbers = #tpu.dot_dimension_numbers<[1], [0], [0], [1], [0, 0, 1, 1], [], []>} : vector<16x16xf32>, vector<16x512xf32>, vector<16x512xf32> -> vector<16x512xf32>
    %22 = arith.mulf %11, %21 : vector<16x512xf32>
    %23 = vector.broadcast %2 : vector<1x512xf32> to vector<16x512xf32>
    %24 = arith.addf %22, %23 : vector<16x512xf32>
    %25 = vector.extract_strided_slice %24 {offsets = [0, 0], sizes = [16, 256], strides = [1, 1]} : vector<16x512xf32> to vector<16x256xf32>
    %26 = vector.extract_strided_slice %24 {offsets = [0, 256], sizes = [16, 256], strides = [1, 1]} : vector<16x512xf32> to vector<16x256xf32>
    %27 = arith.mulf %25, %26 : vector<16x256xf32>
    %c0_13 = arith.constant 0 : index
    %c0_14 = arith.constant 0 : index
    %28 = vector.load %arg5[%c0_13, %c0_14] : memref<256x128xf32, #tpu.memory_space<vmem>>, vector<256x128xf32>
    %cst_15 = arith.constant dense<0.000000e+00> : vector<16x128xf32>
    %29 = tpu.matmul %27, %28, %cst_15 {dimension_numbers = #tpu.dot_dimension_numbers<[1], [0], [0], [1], [0, 0, 1, 1], [], []>} : vector<16x256xf32>, vector<256x128xf32>, vector<16x128xf32> -> vector<16x128xf32>
    %30 = vector.broadcast %3 : vector<1x128xf32> to vector<16x128xf32>
    %31 = arith.addf %29, %30 : vector<16x128xf32>
    %c0_16 = arith.constant 0 : index
    %c0_17 = arith.constant 0 : index
    %32 = vector.load %arg7[%c0_16, %c0_17] : memref<16x128xf32, #tpu.memory_space<vmem>>, vector<16x128xf32>
    tpu.vector_store %arg7[%c0_16, %c0_17], %31 {strides = array<i32>} : memref<16x128xf32, #tpu.memory_space<vmem>>, vector<16x128xf32>,
    return
  }
  func.func @transform_0(%arg0: i32) -> (i32, i32) {
    %c0_i32 = arith.constant 0 : i32
    %c0_i32_0 = arith.constant 0 : i32
    return %arg0, %c0_i32 : i32, i32
  }
  func.func @transform_1(%arg0: i32) -> (i32, i32) {
    %c0_i32 = arith.constant 0 : i32
    %c0_i32_0 = arith.constant 0 : i32
    %c0_i32_1 = arith.constant 0 : i32
    return %c0_i32, %c0_i32_0 : i32, i32
  }
  func.func @transform_2(%arg0: i32) -> (i32, i32) {
    %c0_i32 = arith.constant 0 : i32
    %c0_i32_0 = arith.constant 0 : i32
    %c0_i32_1 = arith.constant 0 : i32
    return %c0_i32, %c0_i32_0 : i32, i32
  }
  func.func @transform_3(%arg0: i32) -> (i32, i32) {
    %c0_i32 = arith.constant 0 : i32
    %c0_i32_0 = arith.constant 0 : i32
    %c0_i32_1 = arith.constant 0 : i32
    return %c0_i32, %c0_i32_0 : i32, i32
  }
  func.func @transform_4(%arg0: i32) -> (i32, i32) {
    %c0_i32 = arith.constant 0 : i32
    %c0_i32_0 = arith.constant 0 : i32
    %c0_i32_1 = arith.constant 0 : i32
    return %c0_i32, %c0_i32_0 : i32, i32
  }
  func.func @transform_5(%arg0: i32) -> (i32, i32) {
    %c0_i32 = arith.constant 0 : i32
    %c0_i32_0 = arith.constant 0 : i32
    %c0_i32_1 = arith.constant 0 : i32
    return %c0_i32, %c0_i32_0 : i32, i32
  }
  func.func @transform_6(%arg0: i32) -> (i32, i32) {
    %c0_i32 = arith.constant 0 : i32
    %c0_i32_0 = arith.constant 0 : i32
    return %arg0, %c0_i32 : i32, i32
  }
}

</mosaic_0001>

<llo_original>
// kernel: tpu_custom_call.1
$region0: #{tpu_custom_call.1}
  #allocation0 [shape = 'u32[]', space=smem, size = 0x4, offset = 0x4, fixed_abs, tag = 'smem constant byte address 0x4 - core index']
  #allocation1 [shape = 'u32[72,128]{1,0:T(1,128)}', space=vmem, size = 0x9000, scoped, tag = 'internal scratch']
  %s0 = inlined_call_operand.vmem [shape: f32[32,128], index: 0, kind: input, shape index: {}]
  %s1 = inlined_call_operand.hbm [shape: f32[128,1024], index: 1, kind: input, shape index: {}]
  %s2 = inlined_call_operand.vmem [shape: f32[512,16], index: 2, kind: input, shape index: {}]
  %s3 = inlined_call_operand.vmem [shape: f32[16,512], index: 3, kind: input, shape index: {}]
  %s4 = inlined_call_operand.vmem [shape: f32[256,128], index: 4, kind: input, shape index: {}]
  %s5 = inlined_call_operand.vmem [shape: f32[8,512], index: 5, kind: input, shape index: {}]
  %s6 = inlined_call_operand.hbm [shape: f32[32,128], index: 6, kind: output, shape index: {}]
  %s7 = sld [smem:[#allocation0]]
  $region61: #{tpu_custom_call.1} parent=0
    _
  %s9 = ssub.s32 1, %s7
  %s10 = scalar_select 0, %s9, %s7
  $region1: #{tpu_custom_call.1} parent=0
    #allocation2 [shape = 'u8[524288]{0}', space=vmem, size = 0x80000, scoped, tag = 'input window, operand 1, single buffered']
    #allocation3 [shape = 's32[2]{0}', space=sflag, size = 0x8, scoped, tag = 'scoped memory for tpu_custom_call.1']
    #allocation4 [shape = 's32[2]{0}', space=sflag, size = 0x8, scoped, tag = 'scoped memory for tpu_custom_call.1']
    #allocation5 [shape = 'u8[16384]{0}', space=vmem, size = 0x4000, scoped, tag = 'output window, operand 0']
    %11 = vsyncpa [#allocation3], 0
    %12 = vsyncpa [#allocation4], 0
    %s13 = scalar_lea.sflag [#allocation4], 1
    %14 = vsyncpa %s13, 0
    loop: start=0, step=1, limit=4
    $region2: #{tpu_custom_call.1} parent=1 // loop_pre_header
      _
    $region3: #{tpu_custom_call.1} parent=1 // loop_header
      %s16 = sphi 0, %s20
      %p17 = scmp.ge.s32.totalorder %s16, 4
      %s26 = sphi 0, %s28
      %s29 = sphi 0, %s26
      %s30 = sphi 0, %s29
      %s46 = sphi 0, %s30
      %s50 = sphi 0, %s50
      %s52 = sphi 0, %s50
      %s53 = sphi 0, %s52
      %s67 = sphi 0, %s53
      %s71 = sphi 0, %s71
      %s73 = sphi 0, %s71
      %s74 = sphi 0, %s73
      %s88 = sphi 0, %s74
      %s92 = sphi 0, %s92
      %s94 = sphi 0, %s92
      %s95 = sphi 0, %s94
      %s109 = sphi 0, %s95
      %s113 = sphi 0, %s113
      %s115 = sphi 0, %s113
      %s116 = sphi 0, %s115
      %s130 = sphi 0, %s116
      %s134 = sphi 0, %s134
      %s136 = sphi 0, %s134
      %s137 = sphi 0, %s136
      %s151 = sphi 0, %s137
      %s157 = sphi 0, %s159
      %s160 = sphi 0, %s157
      %s161 = sphi 0, %s160
      %s177 = sphi 0, %s161
    $region4: #{tpu_custom_call.1} parent=1 // loop_header_branch
      %19 = sbr.rel (%p17) target = $region8
    $region5: #{tpu_custom_call.1} parent=1 // loop_body
      %s21 = ssub.s32 %s16, 1
      %s22 = ssub.s32 %s16, 2
      %s23 = sadd.s32 %s16, 1
      %s24 = ssub.s32 %s16, %s23
      %p25 = scmp.eq.s32.totalorder %s24, 0
      %s27 = sadd.s32 %s26, 1
      %s28 = scalar_select %p25, %s26, %s27
      %p31 = pneg %p25
      %p32 = scmp.eq.s32.totalorder %s16, 1
      %p33 = por %p31, %p32
      %p34 = scmp.ne.s32.totalorder %s26, %s29
      %p35 = scmp.eq.s32.totalorder %s16, 0
      %p36 = por %p34, %p35
      %p37 = scmp.ne.s32.totalorder %s26, %s29
      %p38 = scmp.eq.s32.totalorder %s21, 1
      %p39 = por %p37, %p38
      %p40 = scmp.ne.s32.totalorder %s29, %s30
      %p41 = scmp.eq.s32.totalorder %s21, 0
      %p42 = por %p40, %p41
      %p43 = scmp.ne.s32.totalorder %s29, %s30
      %p44 = scmp.eq.s32.totalorder %s22, 1
      %p45 = por %p43, %p44
      %p47 = scmp.ne.s32.totalorder %s30, %s46
      %p48 = scmp.eq.s32.totalorder %s22, 0
      %p49 = por %p47, %p48
      %s51 = sadd.s32 %s50, 1
      %p54 = scmp.eq.s32.totalorder %s16, 1
      %p55 = scmp.ne.s32.totalorder %s50, %s52
      %p56 = scmp.eq.s32.totalorder %s16, 0
      %p57 = por %p55, %p56
      %p58 = scmp.ne.s32.totalorder %s50, %s52
      %p59 = scmp.eq.s32.totalorder %s21, 1
      %p60 = por %p58, %p59
      %p61 = scmp.ne.s32.totalorder %s52, %s53
      %p62 = scmp.eq.s32.totalorder %s21, 0
      %p63 = por %p61, %p62
      %p64 = scmp.ne.s32.totalorder %s52, %s53
      %p65 = scmp.eq.s32.totalorder %s22, 1
      %p66 = por %p64, %p65
      %p68 = scmp.ne.s32.totalorder %s53, %s67
      %p69 = scmp.eq.s32.totalorder %s22, 0
      %p70 = por %p68, %p69
      %s72 = sadd.s32 %s71, 1
      %p75 = scmp.eq.s32.totalorder %s16, 1
      %p76 = scmp.ne.s32.totalorder %s71, %s73
      %p77 = scmp.eq.s32.totalorder %s16, 0
      %p78 = por %p76, %p77
      %p79 = scmp.ne.s32.totalorder %s71, %s73
      %p80 = scmp.eq.s32.totalorder %s21, 1
      %p81 = por %p79, %p80
      %p82 = scmp.ne.s32.totalorder %s73, %s74
      %p83 = scmp.eq.s32.totalorder %s21, 0
      %p84 = por %p82, %p83
      %p85 = scmp.ne.s32.totalorder %s73, %s74
      %p86 = scmp.eq.s32.totalorder %s22, 1
      %p87 = por %p85, %p86
      %p89 = scmp.ne.s32.totalorder %s74, %s88
      %p90 = scmp.eq.s32.totalorder %s22, 0
      %p91 = por %p89, %p90
      %s93 = sadd.s32 %s92, 1
      %p96 = scmp.eq.s32.totalorder %s16, 1
      %p97 = scmp.ne.s32.totalorder %s92, %s94
      %p98 = scmp.eq.s32.totalorder %s16, 0
      %p99 = por %p97, %p98
      %p100 = scmp.ne.s32.totalorder %s92, %s94
      %p101 = scmp.eq.s32.totalorder %s21, 1
      %p102 = por %p100, %p101
      %p103 = scmp.ne.s32.totalorder %s94, %s95
      %p104 = scmp.eq.s32.totalorder %s21, 0
      %p105 = por %p103, %p104
      %p106 = scmp.ne.s32.totalorder %s94, %s95
      %p107 = scmp.eq.s32.totalorder %s22, 1
      %p108 = por %p106, %p107
      %p110 = scmp.ne.s32.totalorder %s95, %s109
      %p111 = scmp.eq.s32.totalorder %s22, 0
      %p112 = por %p110, %p111
      %s114 = sadd.s32 %s113, 1
      %p117 = scmp.eq.s32.totalorder %s16, 1
      %p118 = scmp.ne.s32.totalorder %s113, %s115
      %p119 = scmp.eq.s32.totalorder %s16, 0
      %p120 = por %p118, %p119
      %p121 = scmp.ne.s32.totalorder %s113, %s115
      %p122 = scmp.eq.s32.totalorder %s21, 1
      %p123 = por %p121, %p122
      %p124 = scmp.ne.s32.totalorder %s115, %s116
      %p125 = scmp.eq.s32.totalorder %s21, 0
      %p126 = por %p124, %p125
      %p127 = scmp.ne.s32.totalorder %s115, %s116
      %p128 = scmp.eq.s32.totalorder %s22, 1
      %p129 = por %p127, %p128
      %p131 = scmp.ne.s32.totalorder %s116, %s130
      %p132 = scmp.eq.s32.totalorder %s22, 0
      %p133 = por %p131, %p132
      %s135 = sadd.s32 %s134, 1
      %p138 = scmp.eq.s32.totalorder %s16, 1
      %p139 = scmp.ne.s32.totalorder %s134, %s136
      %p140 = scmp.eq.s32.totalorder %s16, 0
      %p141 = por %p139, %p140
      %p142 = scmp.ne.s32.totalorder %s134, %s136
      %p143 = scmp.eq.s32.totalorder %s21, 1
      %p144 = por %p142, %p143
      %p145 = scmp.ne.s32.totalorder %s136, %s137
      %p146 = scmp.eq.s32.totalorder %s21, 0
      %p147 = por %p145, %p146
      %p148 = scmp.ne.s32.totalorder %s136, %s137
      %p149 = scmp.eq.s32.totalorder %s22, 1
      %p150 = por %p148, %p149
      %p152 = scmp.ne.s32.totalorder %s137, %s151
      %p153 = scmp.eq.s32.totalorder %s22, 0
      %p154 = por %p152, %p153
      %s155 = ssub.s32 %s16, %s23
      %p156 = scmp.eq.s32.totalorder %s155, 0
      %s158 = sadd.s32 %s157, 1
      %s159 = scalar_select %p156, %s157, %s158
      %p162 = pneg %p156
      %p163 = scmp.eq.s32.totalorder %s16, 1
      %p164 = por %p162, %p163
      %p165 = scmp.ne.s32.totalorder %s157, %s160
      %p166 = scmp.eq.s32.totalorder %s16, 0
      %p167 = por %p165, %p166
      %p168 = scmp.ne.s32.totalorder %s157, %s160
      %p169 = scmp.eq.s32.totalorder %s21, 1
      %p170 = por %p168, %p169
      %p171 = scmp.ne.s32.totalorder %s160, %s161
      %p172 = scmp.eq.s32.totalorder %s21, 0
      %p173 = por %p171, %p172
      %p174 = scmp.ne.s32.totalorder %s160, %s161
      %p175 = scmp.eq.s32.totalorder %s22, 1
      %p176 = por %p174, %p175
      %p178 = scmp.ne.s32.totalorder %s161, %s177
      %p179 = scmp.eq.s32.totalorder %s22, 0
      %p180 = por %p178, %p179
      %p181 = scmp.le.s32.totalorder 1, %s16
      %p182 = scmp.lt.s32.totalorder %s16, 3
      %p183 = pnand %p181, %p182
      %p184 = pneg %p183
      // Predicated region
      $region9: #{tpu_custom_call.1} parent=5 // pred_check
        _
      $region10: #{tpu_custom_call.1} parent=5 // pred_check_branch
        %186 = sbr.rel (%p183) target = $region12
      $region11: #{tpu_custom_call.1} parent=5 // pred_region
        %s187 = ssub.s32 %s16, 1
        // Predicated region
        $region13: #{tpu_custom_call.1} parent=11 // pred_check
          %p188 = pneg %p63
        $region14: #{tpu_custom_call.1} parent=11 // pred_check_branch
          %190 = sbr.rel (%p188) target = $region16
        $region15: #{tpu_custom_call.1} parent=11 // pred_region
          %192 = vsyncadd [#allocation3], 0
          %s193 = sshll.u32 %s1, 4
          %s194 = int_to_ptr.hbm [resolvable:$true] %s193
          %s195 = sshll.u32 [#allocation2], 4
          %s196 = int_to_ptr.vmem [resolvable:$true] %s195
          %201 = dma.hbm_to_vmem [thread:$0]  %s194, 16384, %s196, [#allocation3], 1024, 1024, 64
        $region16: #{tpu_custom_call.1} parent=11 // pred_fallthru
          _
        // Predicated region
        $region17: #{tpu_custom_call.1} parent=11 // pred_check
          %p202 = pneg %p84
        $region18: #{tpu_custom_call.1} parent=11 // pred_check_branch
          %204 = sbr.rel (%p202) target = $region20
        $region19: #{tpu_custom_call.1} parent=11 // pred_region
          _
        $region20: #{tpu_custom_call.1} parent=11 // pred_fallthru
          _
        // Predicated region
        $region21: #{tpu_custom_call.1} parent=11 // pred_check
          %p205 = pneg %p105
        $region22: #{tpu_custom_call.1} parent=11 // pred_check_branch
          %207 = sbr.rel (%p205) target = $region24
        $region23: #{tpu_custom_call.1} parent=11 // pred_region
          _
        $region24: #{tpu_custom_call.1} parent=11 // pred_fallthru
          _
        // Predicated region
        $region25: #{tpu_custom_call.1} parent=11 // pred_check
          %p208 = pneg %p126
        $region26: #{tpu_custom_call.1} parent=11 // pred_check_branch
          %210 = sbr.rel (%p208) target = $region28
        $region27: #{tpu_custom_call.1} parent=11 // pred_region
          _
        $region28: #{tpu_custom_call.1} parent=11 // pred_fallthru
          _
        // Predicated region
        $region29: #{tpu_custom_call.1} parent=11 // pred_check
          %p211 = pneg %p147
        $region30: #{tpu_custom_call.1} parent=11 // pred_check_branch
          %213 = sbr.rel (%p211) target = $region32
        $region31: #{tpu_custom_call.1} parent=11 // pred_region
          _
        $region32: #{tpu_custom_call.1} parent=11 // pred_fallthru
          _
      $region12: #{tpu_custom_call.1} parent=5 // pred_fallthru
        _
      %p214 = scmp.lt.s32.totalorder %s16, 2
      // Predicated region
      $region33: #{tpu_custom_call.1} parent=5 // pred_check
        %p215 = pneg %p214
      $region34: #{tpu_custom_call.1} parent=5 // pred_check_branch
        %217 = sbr.rel (%p215) target = $region36
      $region35: #{tpu_custom_call.1} parent=5 // pred_region
        // Predicated region
        $region37: #{tpu_custom_call.1} parent=35 // pred_check
          %p218 = pneg %p36
        $region38: #{tpu_custom_call.1} parent=35 // pred_check_branch
          %220 = sbr.rel (%p218) target = $region40
        $region39: #{tpu_custom_call.1} parent=35 // pred_region
          %s221 = smul.u32 2, %s16
          %p222 = scmp.lt.s32.totalorder %s221, 3
          %s223 = scalar_select %p222, %s221, 3
          %s224 = smul.addr %s223, 8
          %s225 = scalar_lea.vmem %s0, %s224
          %s226 = smul.u32 2, %s16
        $region40: #{tpu_custom_call.1} parent=35 // pred_fallthru
          _
      $region36: #{tpu_custom_call.1} parent=5 // pred_fallthru
        _
      %p227 = scmp.le.s32.totalorder 1, %s16
      %p228 = scmp.lt.s32.totalorder %s16, 3
      %p229 = pnand %p227, %p228
      %p230 = pneg %p229
      // Predicated region
      $region41: #{tpu_custom_call.1} parent=5 // pred_check
        _
      $region42: #{tpu_custom_call.1} parent=5 // pred_check_branch
        %232 = sbr.rel (%p229) target = $region44
      $region43: #{tpu_custom_call.1} parent=5 // pred_region
        %s233 = ssub.s32 %s16, 1
        // Predicated region
        $region45: #{tpu_custom_call.1} parent=43 // pred_check
          %p234 = pneg %p63
        $region46: #{tpu_custom_call.1} parent=43 // pred_check_branch
          %236 = sbr.rel (%p234) target = $region48
        $region47: #{tpu_custom_call.1} parent=43 // pred_region
          %238 = dma.done [#allocation3], 16384
        $region48: #{tpu_custom_call.1} parent=43 // pred_fallthru
          _
        %s239 = smul.u32 2, %s21
        %p240 = scmp.lt.s32.totalorder %s239, 3
        %s241 = scalar_select %p240, %s239, 3
        %s242 = smul.addr %s241, 8
        %s243 = scalar_lea.vmem %s0, %s242
        %p244 = pneg %p42
        %p245 = pneg %p39
        %p246 = pneg %p63
        %p247 = pneg %p60
        %p248 = pneg %p84
        %p249 = pneg %p81
        %p250 = pneg %p105
        %p251 = pneg %p102
        %p252 = pneg %p126
        %p253 = pneg %p123
        %p254 = pneg %p147
        %p255 = pneg %p144
        %p256 = pneg %p173
        %p257 = pneg %p170
        %s258 = sand.u32 %s160, 1
        %s259 = scalar_lea.sflag [#allocation4], %s258
        %s260 = sand.u32 %s160, 1
        %s261 = smul.addr %s260, 16
        %s262 = scalar_lea.vmem [#allocation5], %s261
        %s263 = smul.u32 2, %s21
        %p264 = scmp.lt.s32.totalorder %s263, 3
        %s265 = scalar_select %p264, %s263, 3
        %s266 = smul.addr %s265, 8
        %s267 = scalar_lea.vmem %s0, %s266
        %s268 = smul.u32 2, %s21
        %s269 = smul.u32 2, %s21
        %v270 = vld [vmem:[%s5] sm:$0xff]
        %v271 = vld [vmem:[%s5 + $0x8] sm:$0xff]
        %v272 = vld [vmem:[%s5 + $0x10] sm:$0xff]
        %v273 = vld [vmem:[%s5 + $0x18] sm:$0xff]
        %v274 = vld [vmem:[%s267] sm:$0xff]
        %v275 = vld [vmem:[%s267 + $0x8] sm:$0xff]
        %v276 = vld [vmem:[#allocation2] sm:$0xff]
        %v277 = vld [vmem:[#allocation2 + $0x8] sm:$0xff]
        %v278 = vld [vmem:[#allocation2 + $0x10] sm:$0xff]
        %v279 = vld [vmem:[#allocation2 + $0x18] sm:$0xff]
        %v280 = vld [vmem:[#allocation2 + $0x20] sm:$0xff]
        %v281 = vld [vmem:[#allocation2 + $0x28] sm:$0xff]
        %v282 = vld [vmem:[#allocation2 + $0x30] sm:$0xff]
        %v283 = vld [vmem:[#allocation2 + $0x38] sm:$0xff]
        %v284 = vld [vmem:[#allocation2 + $0x40] sm:$0xff]
        %v285 = vld [vmem:[#allocation2 + $0x48] sm:$0xff]
        %v286 = vld [vmem:[#allocation2 + $0x50] sm:$0xff]
        %v287 = vld [vmem:[#allocation2 + $0x58] sm:$0xff]
        %v288 = vld [vmem:[#allocation2 + $0x60] sm:$0xff]
        %v289 = vld [vmem:[#allocation2 + $0x68] sm:$0xff]
        %v290 = vld [vmem:[#allocation2 + $0x70] sm:$0xff]
        %v291 = vld [vmem:[#allocation2 + $0x78] sm:$0xff]
        %v292 = vld [vmem:[#allocation2 + $0x80] sm:$0xff]
        %v293 = vld [vmem:[#allocation2 + $0x88] sm:$0xff]
        %v294 = vld [vmem:[#allocation2 + $0x90] sm:$0xff]
        %v295 = vld [vmem:[#allocation2 + $0x98] sm:$0xff]
        %v296 = vld [vmem:[#allocation2 + $0xa0] sm:$0xff]
        %v297 = vld [vmem:[#allocation2 + $0xa8] sm:$0xff]
        %v298 = vld [vmem:[#allocation2 + $0xb0] sm:$0xff]
        %v299 = vld [vmem:[#allocation2 + $0xb8] sm:$0xff]
        %v300 = vld [vmem:[#allocation2 + $0xc0] sm:$0xff]
        %v301 = vld [vmem:[#allocation2 + $0xc8] sm:$0xff]
        %v302 = vld [vmem:[#allocation2 + $0xd0] sm:$0xff]
        %v303 = vld [vmem:[#allocation2 + $0xd8] sm:$0xff]
        %v304 = vld [vmem:[#allocation2 + $0xe0] sm:$0xff]
        %v305 = vld [vmem:[#allocation2 + $0xe8] sm:$0xff]
        %v306 = vld [vmem:[#allocation2 + $0xf0] sm:$0xff]
        %v307 = vld [vmem:[#allocation2 + $0xf8] sm:$0xff]
        %v308 = vld [vmem:[#allocation2 + $0x100] sm:$0xff]
        %v309 = vld [vmem:[#allocation2 + $0x108] sm:$0xff]
        %v310 = vld [vmem:[#allocation2 + $0x110] sm:$0xff]
        %v311 = vld [vmem:[#allocation2 + $0x118] sm:$0xff]
        %v312 = vld [vmem:[#allocation2 + $0x120] sm:$0xff]
        %v313 = vld [vmem:[#allocation2 + $0x128] sm:$0xff]
        %v314 = vld [vmem:[#allocation2 + $0x130] sm:$0xff]
        %v315 = vld [vmem:[#allocation2 + $0x138] sm:$0xff]
        %v316 = vld [vmem:[#allocation2 + $0x140] sm:$0xff]
        %v317 = vld [vmem:[#allocation2 + $0x148] sm:$0xff]
        %v318 = vld [vmem:[#allocation2 + $0x150] sm:$0xff]
        %v319 = vld [vmem:[#allocation2 + $0x158] sm:$0xff]
        %v320 = vld [vmem:[#allocation2 + $0x160] sm:$0xff]
        %v321 = vld [vmem:[#allocation2 + $0x168] sm:$0xff]
        %v322 = vld [vmem:[#allocation2 + $0x170] sm:$0xff]
        %v323 = vld [vmem:[#allocation2 + $0x178] sm:$0xff]
        %v324 = vld [vmem:[#allocation2 + $0x180] sm:$0xff]
        %v325 = vld [vmem:[#allocation2 + $0x188] sm:$0xff]
        %v326 = vld [vmem:[#allocation2 + $0x190] sm:$0xff]
        %v327 = vld [vmem:[#allocation2 + $0x198] sm:$0xff]
        %v328 = vld [vmem:[#allocation2 + $0x1a0] sm:$0xff]
        %v329 = vld [vmem:[#allocation2 + $0x1a8] sm:$0xff]
        %v330 = vld [vmem:[#allocation2 + $0x1b0] sm:$0xff]
        %v331 = vld [vmem:[#allocation2 + $0x1b8] sm:$0xff]
        %v332 = vld [vmem:[#allocation2 + $0x1c0] sm:$0xff]
        %v333 = vld [vmem:[#allocation2 + $0x1c8] sm:$0xff]
        %v334 = vld [vmem:[#allocation2 + $0x1d0] sm:$0xff]
        %v335 = vld [vmem:[#allocation2 + $0x1d8] sm:$0xff]
        %v336 = vld [vmem:[#allocation2 + $0x1e0] sm:$0xff]
        %v337 = vld [vmem:[#allocation2 + $0x1e8] sm:$0xff]
        %v338 = vld [vmem:[#allocation2 + $0x1f0] sm:$0xff]
        %v339 = vld [vmem:[#allocation2 + $0x1f8] sm:$0xff]
        %v340 = vld [vmem:[#allocation2 + $0x200] sm:$0xff]
        %v341 = vld [vmem:[#allocation2 + $0x208] sm:$0xff]
        %v342 = vld [vmem:[#allocation2 + $0x210] sm:$0xff]
        %v343 = vld [vmem:[#allocation2 + $0x218] sm:$0xff]
        %v344 = vld [vmem:[#allocation2 + $0x220] sm:$0xff]
        %v345 = vld [vmem:[#allocation2 + $0x228] sm:$0xff]
        %v346 = vld [vmem:[#allocation2 + $0x230] sm:$0xff]
        %v347 = vld [vmem:[#allocation2 + $0x238] sm:$0xff]
        %v348 = vld [vmem:[#allocation2 + $0x240] sm:$0xff]
        %v349 = vld [vmem:[#allocation2 + $0x248] sm:$0xff]
        %v350 = vld [vmem:[#allocation2 + $0x250] sm:$0xff]
        %v351 = vld [vmem:[#allocation2 + $0x258] sm:$0xff]
        %v352 = vld [vmem:[#allocation2 + $0x260] sm:$0xff]
        %v353 = vld [vmem:[#allocation2 + $0x268] sm:$0xff]
        %v354 = vld [vmem:[#allocation2 + $0x270] sm:$0xff]
        %v355 = vld [vmem:[#allocation2 + $0x278] sm:$0xff]
        %v356 = vld [vmem:[#allocation2 + $0x280] sm:$0xff]
        %v357 = vld [vmem:[#allocation2 + $0x288] sm:$0xff]
        %v358 = vld [vmem:[#allocation2 + $0x290] sm:$0xff]
        %v359 = vld [vmem:[#allocation2 + $0x298] sm:$0xff]
        %v360 = vld [vmem:[#allocation2 + $0x2a0] sm:$0xff]
        %v361 = vld [vmem:[#allocation2 + $0x2a8] sm:$0xff]
        %v362 = vld [vmem:[#allocation2 + $0x2b0] sm:$0xff]
        %v363 = vld [vmem:[#allocation2 + $0x2b8] sm:$0xff]
        %v364 = vld [vmem:[#allocation2 + $0x2c0] sm:$0xff]
        %v365 = vld [vmem:[#allocation2 + $0x2c8] sm:$0xff]
        %v366 = vld [vmem:[#allocation2 + $0x2d0] sm:$0xff]
        %v367 = vld [vmem:[#allocation2 + $0x2d8] sm:$0xff]
        %v368 = vld [vmem:[#allocation2 + $0x2e0] sm:$0xff]
        %v369 = vld [vmem:[#allocation2 + $0x2e8] sm:$0xff]
        %v370 = vld [vmem:[#allocation2 + $0x2f0] sm:$0xff]
        %v371 = vld [vmem:[#allocation2 + $0x2f8] sm:$0xff]
        %v372 = vld [vmem:[#allocation2 + $0x300] sm:$0xff]
        %v373 = vld [vmem:[#allocation2 + $0x308] sm:$0xff]
        %v374 = vld [vmem:[#allocation2 + $0x310] sm:$0xff]
        %v375 = vld [vmem:[#allocation2 + $0x318] sm:$0xff]
        %v376 = vld [vmem:[#allocation2 + $0x320] sm:$0xff]
        %v377 = vld [vmem:[#allocation2 + $0x328] sm:$0xff]
        %v378 = vld [vmem:[#allocation2 + $0x330] sm:$0xff]
        %v379 = vld [vmem:[#allocation2 + $0x338] sm:$0xff]
        %v380 = vld [vmem:[#allocation2 + $0x340] sm:$0xff]
        %v381 = vld [vmem:[#allocation2 + $0x348] sm:$0xff]
        %v382 = vld [vmem:[#allocation2 + $0x350] sm:$0xff]
        %v383 = vld [vmem:[#allocation2 + $0x358] sm:$0xff]
        %v384 = vld [vmem:[#allocation2 + $0x360] sm:$0xff]
        %v385 = vld [vmem:[#allocation2 + $0x368] sm:$0xff]
        %v386 = vld [vmem:[#allocation2 + $0x370] sm:$0xff]
        %v387 = vld [vmem:[#allocation2 + $0x378] sm:$0xff]
        %v388 = vld [vmem:[#allocation2 + $0x380] sm:$0xff]
        %v389 = vld [vmem:[#allocation2 + $0x388] sm:$0xff]
        %v390 = vld [vmem:[#allocation2 + $0x390] sm:$0xff]
        %v391 = vld [vmem:[#allocation2 + $0x398] sm:$0xff]
        %v392 = vld [vmem:[#allocation2 + $0x3a0] sm:$0xff]
        %v393 = vld [vmem:[#allocation2 + $0x3a8] sm:$0xff]
        %v394 = vld [vmem:[#allocation2 + $0x3b0] sm:$0xff]
        %v395 = vld [vmem:[#allocation2 + $0x3b8] sm:$0xff]
        %v396 = vld [vmem:[#allocation2 + $0x3c0] sm:$0xff]
        %v397 = vld [vmem:[#allocation2 + $0x3c8] sm:$0xff]
        %v398 = vld [vmem:[#allocation2 + $0x3d0] sm:$0xff]
        %v399 = vld [vmem:[#allocation2 + $0x3d8] sm:$0xff]
        %v400 = vld [vmem:[#allocation2 + $0x3e0] sm:$0xff]
        %v401 = vld [vmem:[#allocation2 + $0x3e8] sm:$0xff]
        %v402 = vld [vmem:[#allocation2 + $0x3f0] sm:$0xff]
        %v403 = vld [vmem:[#allocation2 + $0x3f8] sm:$0xff]
        %404 = vmatpush.msra.mxu0 %v396
        %405 = vmatpush.msra.mxu0 %v388
        %406 = vmatpush.msra.mxu0 %v380
        %407 = vmatpush.msra.mxu0 %v372
        %408 = vmatpush.msra.mxu0 %v364
        %409 = vmatpush.msra.mxu0 %v356
        %410 = vmatpush.msra.mxu0 %v348
        %411 = vmatpush.msra.mxu0 %v340
        %412 = vmatpush.msra.mxu0 %v332
        %413 = vmatpush.msra.mxu0 %v324
        %414 = vmatpush.msra.mxu0 %v316
        %415 = vmatpush.msra.mxu0 %v308
        %416 = vmatpush.msra.mxu0 %v300
        %417 = vmatpush.msra.mxu0 %v292
        %418 = vmatpush.msra.mxu0 %v284
        %419 = vmatpush.msra.mxu0 %v276
        %420 = vmatmul.f32.gmra.mxu0 %v274
        %v421 = vpop.f32.mrf.mxu0
        %v422 = vadd.f32 0.0, %v421
        %423 = vmatmul.f32.gmra.mxu0 %v275
        %v424 = vpop.f32.mrf.mxu0
        %v425 = vadd.f32 0.0, %v424
        %426 = vdwg.mxu0
        %427 = vmatpush.msra.mxu0 %v397
        %428 = vmatpush.msra.mxu0 %v389
        %429 = vmatpush.msra.mxu0 %v381
        %430 = vmatpush.msra.mxu0 %v373
        %431 = vmatpush.msra.mxu0 %v365
        %432 = vmatpush.msra.mxu0 %v357
        %433 = vmatpush.msra.mxu0 %v349
        %434 = vmatpush.msra.mxu0 %v341
        %435 = vmatpush.msra.mxu0 %v333
        %436 = vmatpush.msra.mxu0 %v325
        %437 = vmatpush.msra.mxu0 %v317
        %438 = vmatpush.msra.mxu0 %v309
        %439 = vmatpush.msra.mxu0 %v301
        %440 = vmatpush.msra.mxu0 %v293
        %441 = vmatpush.msra.mxu0 %v285
        %442 = vmatpush.msra.mxu0 %v277
        %443 = vmatmul.f32.gmra.mxu0 %v274
        %v444 = vpop.f32.mrf.mxu0
        %v445 = vadd.f32 0.0, %v444
        %446 = vmatmul.f32.gmra.mxu0 %v275
        %v447 = vpop.f32.mrf.mxu0
        %v448 = vadd.f32 0.0, %v447
        %449 = vdwg.mxu0
        %450 = vmatpush.msra.mxu0 %v398
        %451 = vmatpush.msra.mxu0 %v390
        %452 = vmatpush.msra.mxu0 %v382
        %453 = vmatpush.msra.mxu0 %v374
        %454 = vmatpush.msra.mxu0 %v366
        %455 = vmatpush.msra.mxu0 %v358
        %456 = vmatpush.msra.mxu0 %v350
        %457 = vmatpush.msra.mxu0 %v342
        %458 = vmatpush.msra.mxu0 %v334
        %459 = vmatpush.msra.mxu0 %v326
        %460 = vmatpush.msra.mxu0 %v318
        %461 = vmatpush.msra.mxu0 %v310
        %462 = vmatpush.msra.mxu0 %v302
        %463 = vmatpush.msra.mxu0 %v294
        %464 = vmatpush.msra.mxu0 %v286
        %465 = vmatpush.msra.mxu0 %v278
        %466 = vmatmul.f32.gmra.mxu0 %v274
        %v467 = vpop.f32.mrf.mxu0
        %v468 = vadd.f32 0.0, %v467
        %469 = vmatmul.f32.gmra.mxu0 %v275
        %v470 = vpop.f32.mrf.mxu0
        %v471 = vadd.f32 0.0, %v470
        %472 = vdwg.mxu0
        %473 = vmatpush.msra.mxu0 %v399
        %474 = vmatpush.msra.mxu0 %v391
        %475 = vmatpush.msra.mxu0 %v383
        %476 = vmatpush.msra.mxu0 %v375
        %477 = vmatpush.msra.mxu0 %v367
        %478 = vmatpush.msra.mxu0 %v359
        %479 = vmatpush.msra.mxu0 %v351
        %480 = vmatpush.msra.mxu0 %v343
        %481 = vmatpush.msra.mxu0 %v335
        %482 = vmatpush.msra.mxu0 %v327
        %483 = vmatpush.msra.mxu0 %v319
        %484 = vmatpush.msra.mxu0 %v311
        %485 = vmatpush.msra.mxu0 %v303
        %486 = vmatpush.msra.mxu0 %v295
        %487 = vmatpush.msra.mxu0 %v287
        %488 = vmatpush.msra.mxu0 %v279
        %489 = vmatmul.f32.gmra.mxu0 %v274
        %v490 = vpop.f32.mrf.mxu0
        %v491 = vadd.f32 0.0, %v490
        %492 = vmatmul.f32.gmra.mxu0 %v275
        %v493 = vpop.f32.mrf.mxu0
        %v494 = vadd.f32 0.0, %v493
        %495 = vdwg.mxu0
        %496 = vmatpush.msra.mxu0 %v400
        %497 = vmatpush.msra.mxu0 %v392
        %498 = vmatpush.msra.mxu0 %v384
        %499 = vmatpush.msra.mxu0 %v376
        %500 = vmatpush.msra.mxu0 %v368
        %501 = vmatpush.msra.mxu0 %v360
        %502 = vmatpush.msra.mxu0 %v352
        %503 = vmatpush.msra.mxu0 %v344
        %504 = vmatpush.msra.mxu0 %v336
        %505 = vmatpush.msra.mxu0 %v328
        %506 = vmatpush.msra.mxu0 %v320
        %507 = vmatpush.msra.mxu0 %v312
        %508 = vmatpush.msra.mxu0 %v304
        %509 = vmatpush.msra.mxu0 %v296
        %510 = vmatpush.msra.mxu0 %v288
        %511 = vmatpush.msra.mxu0 %v280
        %512 = vmatmul.f32.gmra.mxu0 %v274
        %v513 = vpop.f32.mrf.mxu0
        %v514 = vadd.f32 0.0, %v513
        %515 = vmatmul.f32.gmra.mxu0 %v275
        %v516 = vpop.f32.mrf.mxu0
        %v517 = vadd.f32 0.0, %v516
        %518 = vdwg.mxu0
        %519 = vmatpush.msra.mxu0 %v401
        %520 = vmatpush.msra.mxu0 %v393
        %521 = vmatpush.msra.mxu0 %v385
        %522 = vmatpush.msra.mxu0 %v377
        %523 = vmatpush.msra.mxu0 %v369
        %524 = vmatpush.msra.mxu0 %v361
        %525 = vmatpush.msra.mxu0 %v353
        %526 = vmatpush.msra.mxu0 %v345
        %527 = vmatpush.msra.mxu0 %v337
        %528 = vmatpush.msra.mxu0 %v329
        %529 = vmatpush.msra.mxu0 %v321
        %530 = vmatpush.msra.mxu0 %v313
        %531 = vmatpush.msra.mxu0 %v305
        %532 = vmatpush.msra.mxu0 %v297
        %533 = vmatpush.msra.mxu0 %v289
        %534 = vmatpush.msra.mxu0 %v281
        %535 = vmatmul.f32.gmra.mxu0 %v274
        %v536 = vpop.f32.mrf.mxu0
        %v537 = vadd.f32 0.0, %v536
        %538 = vmatmul.f32.gmra.mxu0 %v275
        %v539 = vpop.f32.mrf.mxu0
        %v540 = vadd.f32 0.0, %v539
        %541 = vdwg.mxu0
        %542 = vmatpush.msra.mxu0 %v402
        %543 = vmatpush.msra.mxu0 %v394
        %544 = vmatpush.msra.mxu0 %v386
        %545 = vmatpush.msra.mxu0 %v378
        %546 = vmatpush.msra.mxu0 %v370
        %547 = vmatpush.msra.mxu0 %v362
        %548 = vmatpush.msra.mxu0 %v354
        %549 = vmatpush.msra.mxu0 %v346
        %550 = vmatpush.msra.mxu0 %v338
        %551 = vmatpush.msra.mxu0 %v330
        %552 = vmatpush.msra.mxu0 %v322
        %553 = vmatpush.msra.mxu0 %v314
        %554 = vmatpush.msra.mxu0 %v306
        %555 = vmatpush.msra.mxu0 %v298
        %556 = vmatpush.msra.mxu0 %v290
        %557 = vmatpush.msra.mxu0 %v282
        %558 = vmatmul.f32.gmra.mxu0 %v274
        %v559 = vpop.f32.mrf.mxu0
        %v560 = vadd.f32 0.0, %v559
        %561 = vmatmul.f32.gmra.mxu0 %v275
        %v562 = vpop.f32.mrf.mxu0
        %v563 = vadd.f32 0.0, %v562
        %564 = vdwg.mxu0
        %565 = vmatpush.msra.mxu0 %v403
        %566 = vmatpush.msra.mxu0 %v395
        %567 = vmatpush.msra.mxu0 %v387
        %568 = vmatpush.msra.mxu0 %v379
        %569 = vmatpush.msra.mxu0 %v371
        %570 = vmatpush.msra.mxu0 %v363
        %571 = vmatpush.msra.mxu0 %v355
        %572 = vmatpush.msra.mxu0 %v347
        %573 = vmatpush.msra.mxu0 %v339
        %574 = vmatpush.msra.mxu0 %v331
        %575 = vmatpush.msra.mxu0 %v323
        %576 = vmatpush.msra.mxu0 %v315
        %577 = vmatpush.msra.mxu0 %v307
        %578 = vmatpush.msra.mxu0 %v299
        %579 = vmatpush.msra.mxu0 %v291
        %580 = vmatpush.msra.mxu0 %v283
        %581 = vmatmul.f32.gmra.mxu0 %v274
        %v582 = vpop.f32.mrf.mxu0
        %v583 = vadd.f32 0.0, %v582
        %584 = vmatmul.f32.gmra.mxu0 %v275
        %v585 = vpop.f32.mrf.mxu0
        %v586 = vadd.f32 0.0, %v585
        %587 = vdwg.mxu0
        %v588 = vsub.f32 %v422, %v514
        %v589 = vsub.f32 %v445, %v537
        %v590 = vsub.f32 %v468, %v560
        %v591 = vsub.f32 %v491, %v583
        %v592 = vsub.f32 %v425, %v517
        %v593 = vsub.f32 %v448, %v540
        %v594 = vsub.f32 %v471, %v563
        %v595 = vsub.f32 %v494, %v586
        %v596 = vperm.slane %v270, 0
        %v597 = vperm.slane %v271, 0
        %v598 = vperm.slane %v272, 0
        %v599 = vperm.slane %v273, 0
        %v600 = vadd.f32 %v588, %v596
        %v601 = vadd.f32 %v589, %v597
        %v602 = vadd.f32 %v590, %v598
        %v603 = vadd.f32 %v591, %v599
        %v604 = vadd.f32 %v592, %v596
        %v605 = vadd.f32 %v593, %v597
        %v606 = vadd.f32 %v594, %v598
        %v607 = vadd.f32 %v595, %v599
        %v608 = vmul.f32 %v600, %v600
        %v609 = vmul.f32 %v601, %v601
        %v610 = vmul.f32 %v602, %v602
        %v611 = vmul.f32 %v603, %v603
        %v612 = vmul.f32 %v604, %v604
        %v613 = vmul.f32 %v605, %v605
        %v614 = vmul.f32 %v606, %v606
        %v615 = vmul.f32 %v607, %v607
        %v616 = vld [vmem:[%s2] sm:$0xff]
        %v617 = vld [vmem:[%s2 + $0x8] sm:$0xff]
        %v618 = vld [vmem:[%s2 + $0x10] sm:$0xff]
        %v619 = vld [vmem:[%s2 + $0x18] sm:$0xff]
        %v620 = vld [vmem:[%s2 + $0x20] sm:$0xff]
        %v621 = vld [vmem:[%s2 + $0x28] sm:$0xff]
        %v622 = vld [vmem:[%s2 + $0x30] sm:$0xff]
        %v623 = vld [vmem:[%s2 + $0x38] sm:$0xff]
        %v624 = vld [vmem:[%s2 + $0x40] sm:$0xff]
        %v625 = vld [vmem:[%s2 + $0x48] sm:$0xff]
        %v626 = vld [vmem:[%s2 + $0x50] sm:$0xff]
        %v627 = vld [vmem:[%s2 + $0x58] sm:$0xff]
        %v628 = vld [vmem:[%s2 + $0x60] sm:$0xff]
        %v629 = vld [vmem:[%s2 + $0x68] sm:$0xff]
        %v630 = vld [vmem:[%s2 + $0x70] sm:$0xff]
        %v631 = vld [vmem:[%s2 + $0x78] sm:$0xff]
        %v632 = vld [vmem:[%s2 + $0x80] sm:$0xff]
        %v633 = vld [vmem:[%s2 + $0x88] sm:$0xff]
        %v634 = vld [vmem:[%s2 + $0x90] sm:$0xff]
        %v635 = vld [vmem:[%s2 + $0x98] sm:$0xff]
        %v636 = vld [vmem:[%s2 + $0xa0] sm:$0xff]
        %v637 = vld [vmem:[%s2 + $0xa8] sm:$0xff]
        %v638 = vld [vmem:[%s2 + $0xb0] sm:$0xff]
        %v639 = vld [vmem:[%s2 + $0xb8] sm:$0xff]
        %v640 = vld [vmem:[%s2 + $0xc0] sm:$0xff]
        %v641 = vld [vmem:[%s2 + $0xc8] sm:$0xff]
        %v642 = vld [vmem:[%s2 + $0xd0] sm:$0xff]
        %v643 = vld [vmem:[%s2 + $0xd8] sm:$0xff]
        %v644 = vld [vmem:[%s2 + $0xe0] sm:$0xff]
        %v645 = vld [vmem:[%s2 + $0xe8] sm:$0xff]
        %v646 = vld [vmem:[%s2 + $0xf0] sm:$0xff]
        %v647 = vld [vmem:[%s2 + $0xf8] sm:$0xff]
        %v648 = vld [vmem:[%s2 + $0x100] sm:$0xff]
        %v649 = vld [vmem:[%s2 + $0x108] sm:$0xff]
        %v650 = vld [vmem:[%s2 + $0x110] sm:$0xff]
        %v651 = vld [vmem:[%s2 + $0x118] sm:$0xff]
        %v652 = vld [vmem:[%s2 + $0x120] sm:$0xff]
        %v653 = vld [vmem:[%s2 + $0x128] sm:$0xff]
        %v654 = vld [vmem:[%s2 + $0x130] sm:$0xff]
        %v655 = vld [vmem:[%s2 + $0x138] sm:$0xff]
        %v656 = vld [vmem:[%s2 + $0x140] sm:$0xff]
        %v657 = vld [vmem:[%s2 + $0x148] sm:$0xff]
        %v658 = vld [vmem:[%s2 + $0x150] sm:$0xff]
        %v659 = vld [vmem:[%s2 + $0x158] sm:$0xff]
        %v660 = vld [vmem:[%s2 + $0x160] sm:$0xff]
        %v661 = vld [vmem:[%s2 + $0x168] sm:$0xff]
        %v662 = vld [vmem:[%s2 + $0x170] sm:$0xff]
        %v663 = vld [vmem:[%s2 + $0x178] sm:$0xff]
        %v664 = vld [vmem:[%s2 + $0x180] sm:$0xff]
        %v665 = vld [vmem:[%s2 + $0x188] sm:$0xff]
        %v666 = vld [vmem:[%s2 + $0x190] sm:$0xff]
        %v667 = vld [vmem:[%s2 + $0x198] sm:$0xff]
        %v668 = vld [vmem:[%s2 + $0x1a0] sm:$0xff]
        %v669 = vld [vmem:[%s2 + $0x1a8] sm:$0xff]
        %v670 = vld [vmem:[%s2 + $0x1b0] sm:$0xff]
        %v671 = vld [vmem:[%s2 + $0x1b8] sm:$0xff]
        %v672 = vld [vmem:[%s2 + $0x1c0] sm:$0xff]
        %v673 = vld [vmem:[%s2 + $0x1c8] sm:$0xff]
        %v674 = vld [vmem:[%s2 + $0x1d0] sm:$0xff]
        %v675 = vld [vmem:[%s2 + $0x1d8] sm:$0xff]
        %v676 = vld [vmem:[%s2 + $0x1e0] sm:$0xff]
        %v677 = vld [vmem:[%s2 + $0x1e8] sm:$0xff]
        %v678 = vld [vmem:[%s2 + $0x1f0] sm:$0xff]
        %v679 = vld [vmem:[%s2 + $0x1f8] sm:$0xff]
        %680 = vmatpush.msra.mxu0 %v631
        %681 = vmatpush.msra.mxu0 %v630
        %682 = vmatpush.msra.mxu0 %v629
        %683 = vmatpush.msra.mxu0 %v628
        %684 = vmatpush.msra.mxu0 %v627
        %685 = vmatpush.msra.mxu0 %v626
        %686 = vmatpush.msra.mxu0 %v625
        %687 = vmatpush.msra.mxu0 %v624
        %688 = vmatpush.msra.mxu0 %v623
        %689 = vmatpush.msra.mxu0 %v622
        %690 = vmatpush.msra.mxu0 %v621
        %691 = vmatpush.msra.mxu0 %v620
        %692 = vmatpush.msra.mxu0 %v619
        %693 = vmatpush.msra.mxu0 %v618
        %694 = vmatpush.msra.mxu0 %v617
        %695 = vmatpush.msra.mxu0 %v616
        %696 = vmatmul.f32.gmra.mxu0 %v608
        %v697 = vpop.f32.mrf.mxu0
        %v698 = vadd.f32 0.0, %v697
        %699 = vmatmul.f32.gmra.mxu0 %v612
        %v700 = vpop.f32.mrf.mxu0
        %v701 = vadd.f32 0.0, %v700
        %702 = vdwg.mxu0
        %703 = vmatpush.msra.mxu0 %v647
        %704 = vmatpush.msra.mxu0 %v646
        %705 = vmatpush.msra.mxu0 %v645
        %706 = vmatpush.msra.mxu0 %v644
        %707 = vmatpush.msra.mxu0 %v643
        %708 = vmatpush.msra.mxu0 %v642
        %709 = vmatpush.msra.mxu0 %v641
        %710 = vmatpush.msra.mxu0 %v640
        %711 = vmatpush.msra.mxu0 %v639
        %712 = vmatpush.msra.mxu0 %v638
        %713 = vmatpush.msra.mxu0 %v637
        %714 = vmatpush.msra.mxu0 %v636
        %715 = vmatpush.msra.mxu0 %v635
        %716 = vmatpush.msra.mxu0 %v634
        %717 = vmatpush.msra.mxu0 %v633
        %718 = vmatpush.msra.mxu0 %v632
        %719 = vmatmul.f32.gmra.mxu0 %v609
        %v720 = vpop.f32.mrf.mxu0
        %v721 = vadd.f32 %v698, %v720
        %722 = vmatmul.f32.gmra.mxu0 %v613
        %v723 = vpop.f32.mrf.mxu0
        %v724 = vadd.f32 %v701, %v723
        %725 = vdwg.mxu0
        %726 = vmatpush.msra.mxu0 %v663
        %727 = vmatpush.msra.mxu0 %v662
        %728 = vmatpush.msra.mxu0 %v661
        %729 = vmatpush.msra.mxu0 %v660
        %730 = vmatpush.msra.mxu0 %v659
        %731 = vmatpush.msra.mxu0 %v658
        %732 = vmatpush.msra.mxu0 %v657
        %733 = vmatpush.msra.mxu0 %v656
        %734 = vmatpush.msra.mxu0 %v655
        %735 = vmatpush.msra.mxu0 %v654
        %736 = vmatpush.msra.mxu0 %v653
        %737 = vmatpush.msra.mxu0 %v652
        %738 = vmatpush.msra.mxu0 %v651
        %739 = vmatpush.msra.mxu0 %v650
        %740 = vmatpush.msra.mxu0 %v649
        %741 = vmatpush.msra.mxu0 %v648
        %742 = vmatmul.f32.gmra.mxu0 %v610
        %v743 = vpop.f32.mrf.mxu0
        %v744 = vadd.f32 %v721, %v743
        %745 = vmatmul.f32.gmra.mxu0 %v614
        %v746 = vpop.f32.mrf.mxu0
        %v747 = vadd.f32 %v724, %v746
        %748 = vdwg.mxu0
        %749 = vmatpush.msra.mxu0 %v679
        %750 = vmatpush.msra.mxu0 %v678
        %751 = vmatpush.msra.mxu0 %v677
        %752 = vmatpush.msra.mxu0 %v676
        %753 = vmatpush.msra.mxu0 %v675
        %754 = vmatpush.msra.mxu0 %v674
        %755 = vmatpush.msra.mxu0 %v673
        %756 = vmatpush.msra.mxu0 %v672
        %757 = vmatpush.msra.mxu0 %v671
        %758 = vmatpush.msra.mxu0 %v670
        %759 = vmatpush.msra.mxu0 %v669
        %760 = vmatpush.msra.mxu0 %v668
        %761 = vmatpush.msra.mxu0 %v667
        %762 = vmatpush.msra.mxu0 %v666
        %763 = vmatpush.msra.mxu0 %v665
        %764 = vmatpush.msra.mxu0 %v664
        %765 = vmatmul.f32.gmra.mxu0 %v611
        %v766 = vpop.f32.mrf.mxu0
        %v767 = vadd.f32 %v744, %v766
        %768 = vmatmul.f32.gmra.mxu0 %v615
        %v769 = vpop.f32.mrf.mxu0
        %v770 = vadd.f32 %v747, %v769
        %771 = vdwg.mxu0
        %v772 = vmul.f32 %v767, 0.03125
        %v773 = vmul.f32 %v770, 0.03125
        %v774 = vadd.f32 %v772, 1e-06
        %v775 = vadd.f32 %v773, 1e-06
        %v776 = vrsqrt.pop %v774
        %v777 = vmul.f32 %v776, %v774
        %v778 = vmul.f32 %v777, %v776
        %v779 = vmul.f32 0.5, %v778
        %v780 = vsub.f32 1.5, %v779
        %v781 = vmul.f32 %v776, %v780
        %vm782 = vweird.f32 %v774
        %vm783 = vweird.f32 %v776
        %vm784 = vmor %vm782, %vm783
        %v785 = vsel %vm784, %v776, %v781
        %v786 = vrsqrt.pop %v775
        %v787 = vmul.f32 %v786, %v775
        %v788 = vmul.f32 %v787, %v786
        %v789 = vmul.f32 0.5, %v788
        %v790 = vsub.f32 1.5, %v789
        %v791 = vmul.f32 %v786, %v790
        %vm792 = vweird.f32 %v775
        %vm793 = vweird.f32 %v786
        %vm794 = vmor %vm792, %vm793
        %v795 = vsel %vm794, %v786, %v791
        %v796 = vld [vmem:[%s3] sm:$0xff]
        %v797 = vld [vmem:[%s3 + $0x8] sm:$0xff]
        %v798 = vld [vmem:[%s3 + $0x10] sm:$0xff]
        %v799 = vld [vmem:[%s3 + $0x18] sm:$0xff]
        %v800 = vld [vmem:[%s3 + $0x20] sm:$0xff]
        %v801 = vld [vmem:[%s3 + $0x28] sm:$0xff]
        %v802 = vld [vmem:[%s3 + $0x30] sm:$0xff]
        %v803 = vld [vmem:[%s3 + $0x38] sm:$0xff]
        %vm804 = vcmask 130048
        %v806 = vsel %vm804, %v785, 0
        %v809 = vsel %vm804, %v795, 0
        %811 = vmatpush.msra.mxu0 0.0
        %812 = vmatpush.msra.mxu0 0.0
        %813 = vmatpush.msra.mxu0 0.0
        %814 = vmatpush.msra.mxu0 0.0
        %815 = vmatpush.msra.mxu0 0.0
        %816 = vmatpush.msra.mxu0 0.0
        %817 = vmatpush.msra.mxu0 0.0
        %818 = vmatpush.msra.mxu0 0.0
        %819 = vmatpush.msra.mxu0 0.0
        %820 = vmatpush.msra.mxu0 0.0
        %821 = vmatpush.msra.mxu0 0.0
        %822 = vmatpush.msra.mxu0 0.0
        %823 = vmatpush.msra.mxu0 0.0
        %824 = vmatpush.msra.mxu0 0.0
        %825 = vmatpush.msra.mxu0 %v800
        %826 = vmatpush.msra.mxu0 %v796
        %827 = vmatmul.f32.gmra.mxu0 %v806
        %v828 = vpop.f32.mrf.mxu0
        %v829 = vadd.f32 0.0, %v828
        %830 = vmatmul.f32.gmra.mxu0 %v809
        %v831 = vpop.f32.mrf.mxu0
        %v832 = vadd.f32 0.0, %v831
        %833 = vdwg.mxu0
        %834 = vmatpush.msra.mxu0 0.0
        %835 = vmatpush.msra.mxu0 0.0
        %836 = vmatpush.msra.mxu0 0.0
        %837 = vmatpush.msra.mxu0 0.0
        %838 = vmatpush.msra.mxu0 0.0
        %839 = vmatpush.msra.mxu0 0.0
        %840 = vmatpush.msra.mxu0 0.0
        %841 = vmatpush.msra.mxu0 0.0
        %842 = vmatpush.msra.mxu0 0.0
        %843 = vmatpush.msra.mxu0 0.0
        %844 = vmatpush.msra.mxu0 0.0
        %845 = vmatpush.msra.mxu0 0.0
        %846 = vmatpush.msra.mxu0 0.0
        %847 = vmatpush.msra.mxu0 0.0
        %848 = vmatpush.msra.mxu0 %v801
        %849 = vmatpush.msra.mxu0 %v797
        %850 = vmatmul.f32.gmra.mxu0 %v806
        %v851 = vpop.f32.mrf.mxu0
        %v852 = vadd.f32 0.0, %v851
        %853 = vmatmul.f32.gmra.mxu0 %v809
        %v854 = vpop.f32.mrf.mxu0
        %v855 = vadd.f32 0.0, %v854
        %856 = vdwg.mxu0
        %857 = vmatpush.msra.mxu0 0.0
        %858 = vmatpush.msra.mxu0 0.0
        %859 = vmatpush.msra.mxu0 0.0
        %860 = vmatpush.msra.mxu0 0.0
        %861 = vmatpush.msra.mxu0 0.0
        %862 = vmatpush.msra.mxu0 0.0
        %863 = vmatpush.msra.mxu0 0.0
        %864 = vmatpush.msra.mxu0 0.0
        %865 = vmatpush.msra.mxu0 0.0
        %866 = vmatpush.msra.mxu0 0.0
        %867 = vmatpush.msra.mxu0 0.0
        %868 = vmatpush.msra.mxu0 0.0
        %869 = vmatpush.msra.mxu0 0.0
        %870 = vmatpush.msra.mxu0 0.0
        %871 = vmatpush.msra.mxu0 %v802
        %872 = vmatpush.msra.mxu0 %v798
        %873 = vmatmul.f32.gmra.mxu0 %v806
        %v874 = vpop.f32.mrf.mxu0
        %v875 = vadd.f32 0.0, %v874
        %876 = vmatmul.f32.gmra.mxu0 %v809
        %v877 = vpop.f32.mrf.mxu0
        %v878 = vadd.f32 0.0, %v877
        %879 = vdwg.mxu0
        %880 = vmatpush.msra.mxu0 0.0
        %881 = vmatpush.msra.mxu0 0.0
        %882 = vmatpush.msra.mxu0 0.0
        %883 = vmatpush.msra.mxu0 0.0
        %884 = vmatpush.msra.mxu0 0.0
        %885 = vmatpush.msra.mxu0 0.0
        %886 = vmatpush.msra.mxu0 0.0
        %887 = vmatpush.msra.mxu0 0.0
        %888 = vmatpush.msra.mxu0 0.0
        %889 = vmatpush.msra.mxu0 0.0
        %890 = vmatpush.msra.mxu0 0.0
        %891 = vmatpush.msra.mxu0 0.0
        %892 = vmatpush.msra.mxu0 0.0
        %893 = vmatpush.msra.mxu0 0.0
        %894 = vmatpush.msra.mxu0 %v803
        %895 = vmatpush.msra.mxu0 %v799
        %896 = vmatmul.f32.gmra.mxu0 %v806
        %v897 = vpop.f32.mrf.mxu0
        %v898 = vadd.f32 0.0, %v897
        %899 = vmatmul.f32.gmra.mxu0 %v809
        %v900 = vpop.f32.mrf.mxu0
        %v901 = vadd.f32 0.0, %v900
        %902 = vdwg.mxu0
        %v903 = vmul.f32 %v600, %v829
        %v904 = vmul.f32 %v601, %v852
        %v905 = vmul.f32 %v602, %v875
        %v906 = vmul.f32 %v603, %v898
        %v907 = vmul.f32 %v604, %v832
        %v908 = vmul.f32 %v605, %v855
        %v909 = vmul.f32 %v606, %v878
        %v910 = vmul.f32 %v607, %v901
        %v911 = vperm.slane %v270, 1
        %v912 = vperm.slane %v271, 1
        %v913 = vperm.slane %v272, 1
        %v914 = vperm.slane %v273, 1
        %v915 = vadd.f32 %v903, %v911
        %v916 = vadd.f32 %v904, %v912
        %v917 = vadd.f32 %v905, %v913
        %v918 = vadd.f32 %v906, %v914
        %v919 = vadd.f32 %v907, %v911
        %v920 = vadd.f32 %v908, %v912
        %v921 = vadd.f32 %v909, %v913
        %v922 = vadd.f32 %v910, %v914
        %v923 = vmul.f32 %v915, %v917
        %v924 = vmul.f32 %v916, %v918
        %v925 = vmul.f32 %v919, %v921
        %v926 = vmul.f32 %v920, %v922
        %v927 = vld [vmem:[%s4] sm:$0xff]
        %v928 = vld [vmem:[%s4 + $0x8] sm:$0xff]
        %v929 = vld [vmem:[%s4 + $0x10] sm:$0xff]
        %v930 = vld [vmem:[%s4 + $0x18] sm:$0xff]
        %v931 = vld [vmem:[%s4 + $0x20] sm:$0xff]
        %v932 = vld [vmem:[%s4 + $0x28] sm:$0xff]
        %v933 = vld [vmem:[%s4 + $0x30] sm:$0xff]
        %v934 = vld [vmem:[%s4 + $0x38] sm:$0xff]
        %v935 = vld [vmem:[%s4 + $0x40] sm:$0xff]
        %v936 = vld [vmem:[%s4 + $0x48] sm:$0xff]
        %v937 = vld [vmem:[%s4 + $0x50] sm:$0xff]
        %v938 = vld [vmem:[%s4 + $0x58] sm:$0xff]
        %v939 = vld [vmem:[%s4 + $0x60] sm:$0xff]
        %v940 = vld [vmem:[%s4 + $0x68] sm:$0xff]
        %v941 = vld [vmem:[%s4 + $0x70] sm:$0xff]
        %v942 = vld [vmem:[%s4 + $0x78] sm:$0xff]
        %v943 = vld [vmem:[%s4 + $0x80] sm:$0xff]
        %v944 = vld [vmem:[%s4 + $0x88] sm:$0xff]
        %v945 = vld [vmem:[%s4 + $0x90] sm:$0xff]
        %v946 = vld [vmem:[%s4 + $0x98] sm:$0xff]
        %v947 = vld [vmem:[%s4 + $0xa0] sm:$0xff]
        %v948 = vld [vmem:[%s4 + $0xa8] sm:$0xff]
        %v949 = vld [vmem:[%s4 + $0xb0] sm:$0xff]
        %v950 = vld [vmem:[%s4 + $0xb8] sm:$0xff]
        %v951 = vld [vmem:[%s4 + $0xc0] sm:$0xff]
        %v952 = vld [vmem:[%s4 + $0xc8] sm:$0xff]
        %v953 = vld [vmem:[%s4 + $0xd0] sm:$0xff]
        %v954 = vld [vmem:[%s4 + $0xd8] sm:$0xff]
        %v955 = vld [vmem:[%s4 + $0xe0] sm:$0xff]
        %v956 = vld [vmem:[%s4 + $0xe8] sm:$0xff]
        %v957 = vld [vmem:[%s4 + $0xf0] sm:$0xff]
        %v958 = vld [vmem:[%s4 + $0xf8] sm:$0xff]
        %v959 = vperm.slane %v270, 2
        %960 = vmatpush.msra.mxu0 %v942
        %961 = vmatpush.msra.mxu0 %v941
        %962 = vmatpush.msra.mxu0 %v940
        %963 = vmatpush.msra.mxu0 %v939
        %964 = vmatpush.msra.mxu0 %v938
        %965 = vmatpush.msra.mxu0 %v937
        %966 = vmatpush.msra.mxu0 %v936
        %967 = vmatpush.msra.mxu0 %v935
        %968 = vmatpush.msra.mxu0 %v934
        %969 = vmatpush.msra.mxu0 %v933
        %970 = vmatpush.msra.mxu0 %v932
        %971 = vmatpush.msra.mxu0 %v931
        %972 = vmatpush.msra.mxu0 %v930
        %973 = vmatpush.msra.mxu0 %v929
        %974 = vmatpush.msra.mxu0 %v928
        %975 = vmatpush.msra.mxu0 %v927
        %976 = vmatmul.f32.gmra.mxu0 %v923
        %v977 = vpop.f32.mrf.mxu0
        %v978 = vadd.f32 %v959, %v977
        %979 = vmatmul.f32.gmra.mxu0 %v925
        %v980 = vpop.f32.mrf.mxu0
        %v981 = vadd.f32 %v959, %v980
        %982 = vdwg.mxu0
        %983 = vmatpush.msra.mxu0 %v958
        %984 = vmatpush.msra.mxu0 %v957
        %985 = vmatpush.msra.mxu0 %v956
        %986 = vmatpush.msra.mxu0 %v955
        %987 = vmatpush.msra.mxu0 %v954
        %988 = vmatpush.msra.mxu0 %v953
        %989 = vmatpush.msra.mxu0 %v952
        %990 = vmatpush.msra.mxu0 %v951
        %991 = vmatpush.msra.mxu0 %v950
        %992 = vmatpush.msra.mxu0 %v949
        %993 = vmatpush.msra.mxu0 %v948
        %994 = vmatpush.msra.mxu0 %v947
        %995 = vmatpush.msra.mxu0 %v946
        %996 = vmatpush.msra.mxu0 %v945
        %997 = vmatpush.msra.mxu0 %v944
        %998 = vmatpush.msra.mxu0 %v943
        %999 = vmatmul.f32.gmra.mxu0 %v924
        %v1000 = vpop.f32.mrf.mxu0
        %v1001 = vadd.f32 %v978, %v1000
        %1002 = vmatmul.f32.gmra.mxu0 %v926
        %v1003 = vpop.f32.mrf.mxu0
        %v1004 = vadd.f32 %v981, %v1003
        %1005 = vdwg.mxu0
        %1006 = vst [vmem:[%s262] sm:$0xff] %v1001
        %1007 = vst [vmem:[%s262 + $0x8] sm:$0xff] %v1004
        %s1008 = sand.u32 %s160, 1
        %s1009 = scalar_lea.sflag [#allocation4], %s1008
        %s1010 = sand.u32 %s160, 1
        %s1011 = smul.addr %s1010, 16
        %s1012 = scalar_lea.vmem [#allocation5], %s1011
        // Predicated region
        $region49: #{tpu_custom_call.1} parent=43 // pred_check
          %p1013 = pneg %p170
        $region50: #{tpu_custom_call.1} parent=43 // pred_check_branch
          %1015 = sbr.rel (%p1013) target = $region52
        $region51: #{tpu_custom_call.1} parent=43 // pred_region
          %s1016 = smul.u32 2, %s21
          %1018 = vsyncadd %s1009, 0
          %s1019 = smul.addr %s1016, 8
          %s1020 = scalar_lea.hbm %s6, %s1019
          %s1021 = sshll.u32 %s1012, 4
          %s1022 = int_to_ptr.vmem [resolvable:$true] %s1021
          %s1023 = sshll.u32 %s1020, 4
          %s1024 = int_to_ptr.hbm [resolvable:$true] %s1023
          %1029 = dma.vmem_to_hbm [thread:$0]  %s1022, 256, %s1024, %s1009, 128, 128, 8
        $region52: #{tpu_custom_call.1} parent=43 // pred_fallthru
          _
      $region44: #{tpu_custom_call.1} parent=5 // pred_fallthru
        _
      %p1030 = scmp.le.s32.totalorder 2, %s16
      // Predicated region
      $region53: #{tpu_custom_call.1} parent=5 // pred_check
        %p1031 = pneg %p1030
      $region54: #{tpu_custom_call.1} parent=5 // pred_check_branch
        %1033 = sbr.rel (%p1031) target = $region56
      $region55: #{tpu_custom_call.1} parent=5 // pred_region
        %s1034 = ssub.s32 %s16, 2
        // Predicated region
        $region57: #{tpu_custom_call.1} parent=55 // pred_check
          %p1035 = pneg %p176
        $region58: #{tpu_custom_call.1} parent=55 // pred_check_branch
          %1037 = sbr.rel (%p1035) target = $region60
        $region59: #{tpu_custom_call.1} parent=55 // pred_region
          %s1038 = sand.u32 %s161, 1
          %s1039 = scalar_lea.sflag [#allocation4], %s1038
          %s1040 = sand.u32 %s161, 1
          %s1041 = smul.addr %s1040, 16
          %s1042 = scalar_lea.vmem [#allocation5], %s1041
          %1044 = dma.done %s1039, 256
        $region60: #{tpu_custom_call.1} parent=55 // pred_fallthru
          _
      $region56: #{tpu_custom_call.1} parent=5 // pred_fallthru
        _
    $region6: #{tpu_custom_call.1} parent=1 // loop_footer
      %s20 = sadd.s32 1, %s16
    $region7: #{tpu_custom_call.1} parent=1 // loop_footer_branch
      %15 = sbr.rel target = $region3
    $region8: #{tpu_custom_call.1} parent=1 // loop_exit
      _
    %1045 = vsyncpa [#allocation3], 1
    %s1046 = scalar_lea.sflag [#allocation3], 1
    %1047 = vsyncpa %s1046, 1
    %1048 = vsyncpa [#allocation4], 1
    %s1049 = scalar_lea.sflag [#allocation4], 1
    %1050 = vsyncpa %s1049, 1

</llo_original>
